<compile_context>
chip_gen: v7x
topology: tpu7x:2x2x1
jax: 0.10.0
libtpu: 0.0.40
codegen_flags: <defaults>
</compile_context>

<pallas_src>
import functools

import jax
import jax.numpy as jnp
from jax.experimental import pallas as pl
from jax.experimental.pallas import tpu as pltpu


# ----------------------------------------------------------------------------
# small helpers
# ----------------------------------------------------------------------------
def _round_up(x, m):
    return (x + m - 1) // m * m


def _pick_tile(dim, max_tile):
    """Largest multiple of 128 <= max_tile that divides dim (dim % 128 == 0)."""
    t = min(max_tile, dim)
    t -= t % 128
    while dim % t:
        t -= 128
    return t


def _rows_block(m, target):
    """Row-block size: multiple of 16 dividing m (bf16 sublane packing), close
    to target; falls back to full m (always a legal full-dim block)."""
    if m % 16 == 0:
        t = min(target, m)
        t -= t % 16
        while m % t:
            t -= 16
        return t
    return m


# ----------------------------------------------------------------------------
# Pallas kernels
# ----------------------------------------------------------------------------
def _matmul_stats_kernel(x_ref, w_ref, o_ref, sum_ref, sq_ref, acc_ref):
    """Tiled matmul with fused per-column sum / sum-of-squares (BN stats)."""
    @pl.when(pl.program_id(2) == 0)
    def _():
        acc_ref[...] = jnp.zeros_like(acc_ref)

    acc_ref[...] += jnp.dot(x_ref[...], w_ref[...],
                            preferred_element_type=jnp.float32)

    @pl.when(pl.program_id(2) == pl.num_programs(2) - 1)
    def _():
        acc = acc_ref[...]
        o_ref[...] = acc.astype(o_ref.dtype)
        csum = jnp.sum(acc, axis=0, keepdims=True)
        csq = jnp.sum(acc * acc, axis=0, keepdims=True)
        sum_ref[...] = jnp.broadcast_to(csum, sum_ref.shape)
        sq_ref[...] = jnp.broadcast_to(csq, sq_ref.shape)


def _matmul_bias_kernel(x_ref, w_ref, b_ref, o_ref, acc_ref):
    """Tiled matmul with the bias add fused into the epilogue (fc layer)."""
    @pl.when(pl.program_id(2) == 0)
    def _():
        acc_ref[...] = jnp.zeros_like(acc_ref)

    acc_ref[...] += jnp.dot(x_ref[...], w_ref[...],
                            preferred_element_type=jnp.float32)

    @pl.when(pl.program_id(2) == pl.num_programs(2) - 1)
    def _():
        o_ref[...] = (acc_ref[...] + b_ref[...]).astype(o_ref.dtype)


def _bn_act_kernel(y_ref, s_ref, b_ref, o_ref, *, relu):
    out = y_ref[...].astype(jnp.float32) * s_ref[...] + b_ref[...]
    if relu:
        out = jnp.maximum(out, 0.0)
    o_ref[...] = out.astype(o_ref.dtype)


def _bn_act_res_kernel(y_ref, s_ref, b_ref, r_ref, o_ref, *, relu):
    out = (y_ref[...].astype(jnp.float32) * s_ref[...] + b_ref[...]
           + r_ref[...].astype(jnp.float32))
    if relu:
        out = jnp.maximum(out, 0.0)
    o_ref[...] = out.astype(o_ref.dtype)


def _maxpool_kernel(a_ref, b_ref, c_ref, d_ref, o_ref):
    """3x3/s2/p1 max pool from the 4 even/odd phase tensors of the padded
    input: all 9 taps are contiguous shifted slices (pure VPU maxima)."""
    ho, wo = o_ref.shape[1], o_ref.shape[2]
    a = a_ref[0]
    b = b_ref[0]
    c = c_ref[0]
    d = d_ref[0]
    m = a[0:ho, 0:wo, :]
    m = jnp.maximum(m, a[0:ho, 1:wo + 1, :])
    m = jnp.maximum(m, a[1:ho + 1, 0:wo, :])
    m = jnp.maximum(m, a[1:ho + 1, 1:wo + 1, :])
    m = jnp.maximum(m, b[0:ho, 0:wo, :])
    m = jnp.maximum(m, b[1:ho + 1, 0:wo, :])
    m = jnp.maximum(m, c[0:ho, 0:wo, :])
    m = jnp.maximum(m, c[0:ho, 1:wo + 1, :])
    m = jnp.maximum(m, d[0:ho, 0:wo, :])
    o_ref[0] = m


def _mean_pool_kernel(x_ref, o_ref):
    o_ref[...] = jnp.mean(x_ref[...].astype(jnp.float32), axis=1)


# ----------------------------------------------------------------------------
# Pallas wrappers
# ----------------------------------------------------------------------------
def pallas_matmul_stats(x, w, out_dtype=jnp.bfloat16):
    """y = x @ w (bf16 MXU, f32 accumulate) plus per-column sum / sum-sq of y."""
    m0, k0 = x.shape
    _, c0 = w.shape
    xp = x.astype(jnp.bfloat16)
    wp = w.astype(jnp.bfloat16)

    m = m0
    if m % 16 and m > 1024:            # avoid one huge ragged row block
        m = _round_up(m, 16)
        xp = jnp.pad(xp, ((0, m - m0), (0, 0)))
    kp = _round_up(k0, 128)
    cp = _round_up(c0, 128)
    if kp != k0:
        xp = jnp.pad(xp, ((0, 0), (0, kp - k0)))
    if (kp, cp) != (k0, c0):
        wp = jnp.pad(wp, ((0, kp - k0), (0, cp - c0)))

    tm = _rows_block(m, 256)
    tk = _pick_tile(kp, 512)
    tn = _pick_tile(cp, 256)
    n_m = m // tm

    y, csum, csq = pl.pallas_call(
        _matmul_stats_kernel,
        out_shape=(jax.ShapeDtypeStruct((m, cp), out_dtype),
                   jax.ShapeDtypeStruct((n_m * 8, cp), jnp.float32),
                   jax.ShapeDtypeStruct((n_m * 8, cp), jnp.float32)),
        grid_spec=pltpu.PrefetchScalarGridSpec(
            num_scalar_prefetch=0,
            grid=(n_m, cp // tn, kp // tk),
            in_specs=[pl.BlockSpec((tm, tk), lambda i, j, k: (i, k)),
                      pl.BlockSpec((tk, tn), lambda i, j, k: (k, j))],
            out_specs=(pl.BlockSpec((tm, tn), lambda i, j, k: (i, j)),
                       pl.BlockSpec((8, tn), lambda i, j, k: (i, j)),
                       pl.BlockSpec((8, tn), lambda i, j, k: (i, j))),
            scratch_shapes=[pltpu.VMEM((tm, tn), jnp.float32)]),
        compiler_params=pltpu.CompilerParams(
            dimension_semantics=("parallel", "parallel", "arbitrary")),
    )(xp, wp)

    csum = csum.reshape(n_m, 8, cp)[:, 0, :c0].sum(axis=0)
    csq = csq.reshape(n_m, 8, cp)[:, 0, :c0].sum(axis=0)
    if (m, cp) != (m0, c0):
        y = y[:m0, :c0]
    return y, csum, csq


def pallas_matmul_bias(x, w, bias):
    """(M, K) @ (K, N) + bias -> f32 (M, N); bf16 operands, f32 accumulate."""
    m0, k0 = x.shape
    _, n0 = w.shape
    xp = x.astype(jnp.bfloat16)
    wp = w.astype(jnp.bfloat16)
    kp = _round_up(k0, 128)
    np_ = _round_up(n0, 128)
    if kp != k0:
        xp = jnp.pad(xp, ((0, 0), (0, kp - k0)))
    if (kp, np_) != (k0, n0):
        wp = jnp.pad(wp, ((0, kp - k0), (0, np_ - n0)))
    b2d = jnp.pad(bias.astype(jnp.float32).reshape(1, n0),
                  ((0, 0), (0, np_ - n0)))

    tm = _rows_block(m0, 256)
    tk = _pick_tile(kp, 512)
    tn = _pick_tile(np_, 256)

    out = pl.pallas_call(
        _matmul_bias_kernel,
        out_shape=jax.ShapeDtypeStruct((m0, np_), jnp.float32),
        grid_spec=pltpu.PrefetchScalarGridSpec(
            num_scalar_prefetch=0,
            grid=(m0 // tm, np_ // tn, kp // tk),
            in_specs=[pl.BlockSpec((tm, tk), lambda i, j, k: (i, k)),
                      pl.BlockSpec((tk, tn), lambda i, j, k: (k, j)),
                      pl.BlockSpec((1, tn), lambda i, j, k: (0, j))],
            out_specs=pl.BlockSpec((tm, tn), lambda i, j, k: (i, j)),
            scratch_shapes=[pltpu.VMEM((tm, tn), jnp.float32)]),
        compiler_params=pltpu.CompilerParams(
            dimension_semantics=("parallel", "parallel", "arbitrary")),
    )(xp, wp, b2d)
    return out[:, :n0] if np_ != n0 else out


def pallas_bn_act(y2d, scale, bias, residual2d=None, relu=True,
                  out_dtype=jnp.bfloat16):
    """Fused y*scale + bias (+ residual) (+ ReLU), tiled over rows."""
    m, c = y2d.shape
    tm = _rows_block(m, 512)
    s2d = scale.reshape(1, c).astype(jnp.float32)
    b2d = bias.reshape(1, c).astype(jnp.float32)

    row_spec = pl.BlockSpec((tm, c), lambda i: (i, 0))
    vec_spec = pl.BlockSpec((1, c), lambda i: (0, 0))
    if residual2d is None:
        kernel = functools.partial(_bn_act_kernel, relu=relu)
        operands = (y2d, s2d, b2d)
        in_specs = [row_spec, vec_spec, vec_spec]
    else:
        kernel = functools.partial(_bn_act_res_kernel, relu=relu)
        operands = (y2d, s2d, b2d, residual2d)
        in_specs = [row_spec, vec_spec, vec_spec, row_spec]

    return pl.pallas_call(
        kernel,
        out_shape=jax.ShapeDtypeStruct((m, c), out_dtype),
        grid=(m // tm,),
        in_specs=in_specs,
        out_specs=row_spec,
        compiler_params=pltpu.CompilerParams(
            dimension_semantics=("parallel",)),
    )(*operands)


def maxpool_3x3_s2_p1(x_nhwc):
    n, h, w, c = x_nhwc.shape
    assert h % 2 == 0 and w % 2 == 0, "maxpool kernel assumes even H, W"
    ho, wo = h // 2, w // 2
    xp = jnp.pad(x_nhwc, ((0, 0), (1, 1), (1, 1), (0, 0)),
                 constant_values=-jnp.inf)
    # even / odd phase split: all 9 pooling taps become contiguous slices
    a = xp[:, 0::2, 0::2, :]
    b = xp[:, 0::2, 1::2, :]
    cc = xp[:, 1::2, 0::2, :]
    d = xp[:, 1::2, 1::2, :]
    h2, w2 = ho + 1, wo + 1
    phase_spec = pl.BlockSpec((1, h2, w2, c), lambda i: (i, 0, 0, 0))
    return pl.pallas_call(
        _maxpool_kernel,
        out_shape=jax.ShapeDtypeStruct((n, ho, wo, c), x_nhwc.dtype),
        grid=(n,),
        in_specs=[phase_spec, phase_spec, phase_spec, phase_spec],
        out_specs=pl.BlockSpec((1, ho, wo, c), lambda i: (i, 0, 0, 0)),
        compiler_params=pltpu.CompilerParams(
            dimension_semantics=("parallel",)),
    )(a, b, cc, d)


def global_avgpool(x_nhwc):
    n, h, w, c = x_nhwc.shape
    x3 = x_nhwc.reshape(n, h * w, c)
    return pl.pallas_call(
        _mean_pool_kernel,
        out_shape=jax.ShapeDtypeStruct((n, c), jnp.float32),
        grid=(1,),
        in_specs=[pl.BlockSpec((n, h * w, c), lambda i: (0, 0, 0))],
        out_specs=pl.BlockSpec((n, c), lambda i: (0, 0)),
    )(x3)


# ----------------------------------------------------------------------------
# model glue (im2col for 3x3/7x7, BN folding, forward pass)
# ----------------------------------------------------------------------------
def _im2col(x_nhwc, kh, kw, stride, pad):
    n, h, w, _ = x_nhwc.shape
    ho = (h + 2 * pad - kh) // stride + 1
    wo = (w + 2 * pad - kw) // stride + 1
    xp = jnp.pad(x_nhwc, ((0, 0), (pad, pad), (pad, pad), (0, 0)))
    cols = []
    for i in range(kh):
        for j in range(kw):
            cols.append(xp[:, i:i + ho * stride:stride,
                           j:j + wo * stride:stride, :])
    patches = jnp.stack(cols, axis=3)          # (N, Ho, Wo, kh*kw, C), bf16
    return patches, n, ho, wo


def _bn_fold(csum, csq, m_rows, gamma, beta, eps=1e-5):
    # training-mode BatchNorm (fresh nn.BatchNorm2d): biased batch statistics
    mean = csum / m_rows
    var = jnp.maximum(csq / m_rows - mean * mean, 0.0)
    scale = gamma / jnp.sqrt(var + eps)
    bias = beta - mean * scale
    return scale, bias


def conv_bn(x_nhwc, cp, relu, residual2d=None):
    ksz, stride = cp["ksz"], cp["stride"]
    cout = cp["w2d"].shape[1]
    if ksz == 1:
        xs = x_nhwc if stride == 1 else x_nhwc[:, ::stride, ::stride, :]
        n, ho, wo, cin = xs.shape
        x2d = xs.reshape(n * ho * wo, cin)
    else:
        patches, n, ho, wo = _im2col(x_nhwc, ksz, ksz, stride, cp["pad"])
        x2d = patches.reshape(n * ho * wo, ksz * ksz * x_nhwc.shape[-1])
    y2d, csum, csq = pallas_matmul_stats(x2d, cp["w2d"])
    scale, bias = _bn_fold(csum, csq, y2d.shape[0], cp["gamma"], cp["beta"])
    out2d = pallas_bn_act(y2d, scale, bias, residual2d=residual2d, relu=relu)
    return out2d.reshape(n, ho, wo, cout)


def block_forward(x, blk):
    identity = x
    out = conv_bn(x, blk["conv1"], relu=True)
    out = conv_bn(out, blk["conv2"], relu=True)
    if "ds" in blk:
        identity = conv_bn(x, blk["ds"], relu=False)
    res2d = identity.reshape(-1, identity.shape[-1])
    out = conv_bn(out, blk["conv3"], relu=True, residual2d=res2d)
    return out


def resnet_forward(x_nchw, params):
    x = jnp.transpose(x_nchw, (0, 2, 3, 1)).astype(jnp.bfloat16)  # NCHW->NHWC
    x = conv_bn(x, params["stem"], relu=True)
    x = maxpool_3x3_s2_p1(x)
    for layer_blocks in params["layers"]:
        for blk in layer_blocks:
            x = block_forward(x, blk)
    pooled = global_avgpool(x)                                    # (N, 2048)
    return pallas_matmul_bias(pooled, params["fc_wT"], params["fc_b"])


# ----------------------------------------------------------------------------
# parameter init (weight transform hoisted out of the forward hot path)
# ----------------------------------------------------------------------------
def _prep_conv(key, cout, cin, ksz, stride, pad):
    w = jax.random.normal(key, (cout, cin, ksz, ksz), jnp.float32) * 0.05
    # torch (Cout, Cin, kh, kw) -> (kh*kw*Cin, Cout), bf16, done once at init
    w2d = jnp.transpose(w, (2, 3, 1, 0)).reshape(ksz * ksz * cin, cout)
    return {"w2d": w2d.astype(jnp.bfloat16), "ksz": ksz, "stride": stride,
            "pad": pad, "gamma": jnp.ones((cout,), jnp.float32),
            "beta": jnp.zeros((cout,), jnp.float32)}


def init_params(key, layers, image_channels, num_classes):
    keys = iter(jax.random.split(key, 256))
    params = {"stem": _prep_conv(next(keys), 64, image_channels, 7, 2, 3)}
    in_ch = 64
    layer_params = []
    for nblocks, inter, stride in zip(layers, (64, 128, 256, 512),
                                      (1, 2, 2, 2)):
        blocks = []
        for bidx in range(nblocks):
            s = stride if bidx == 0 else 1
            blk = {"conv1": _prep_conv(next(keys), inter, in_ch, 1, 1, 0),
                   "conv2": _prep_conv(next(keys), inter, inter, 3, s, 1),
                   "conv3": _prep_conv(next(keys), inter * 4, inter, 1, 1, 0)}
            if s != 1 or in_ch != inter * 4:
                blk["ds"] = _prep_conv(next(keys), inter * 4, in_ch, 1, s, 0)
            blocks.append(blk)
            in_ch = inter * 4
        layer_params.append(blocks)
    params["layers"] = layer_params
    params["fc_wT"] = (jax.random.normal(next(keys), (num_classes, 512 * 4),
                                         jnp.float32) * 0.02).T.astype(jnp.bfloat16)
    params["fc_b"] = jnp.zeros((num_classes,), jnp.float32)
    return params


if __name__ == "__main__":
    key = jax.random.PRNGKey(0)
    pkey, xkey = jax.random.split(key)

    layers = [1, 1, 1, 1]          # one bottleneck block per stage (small)
    image_channels = 3
    num_classes = 10

    params = init_params(pkey, layers, image_channels, num_classes)
    x = jax.random.normal(xkey, (2, image_channels, 16, 16), jnp.float32)

    out = resnet_forward(x, params)
    out = jax.block_until_ready(out)

    assert out.shape == (2, num_classes), out.shape
    assert bool(jnp.all(jnp.isfinite(out)))
    print("KERNEL_OK")
</pallas_src>

<mosaic_0001>
module attributes {stable_mosaic.version = 11 : i64} {
  func.func @_matmul_stats_kernel(%arg0: i32, %arg1: i32, %arg2: i32, %arg3: memref<128x256xbf16, #tpu.memory_space<vmem>>, %arg4: memref<256x128xbf16, #tpu.memory_space<vmem>>, %arg5: memref<128x128xbf16, #tpu.memory_space<vmem>>, %arg6: memref<8x128xf32, #tpu.memory_space<vmem>>, %arg7: memref<8x128xf32, #tpu.memory_space<vmem>>, %arg8: memref<128x128xf32, #tpu.memory_space<vmem>>) attributes {dimension_semantics = [#tpu.dimension_semantics<parallel>, #tpu.dimension_semantics<parallel>, #tpu.dimension_semantics<arbitrary>], iteration_bounds = array<i64: 1, 1, 1>, scalar_prefetch = 0 : i64, scratch_operands = 1 : i64, tpu.core_type = #tpu.core_type<tc>, window_params = [{transform_indices = @transform_0, window_bounds = array<i64: 128, 256>}, {transform_indices = @transform_1, window_bounds = array<i64: 256, 128>}, {transform_indices = @transform_2, window_bounds = array<i64: 128, 128>}, {transform_indices = @transform_3, window_bounds = array<i64: 8, 128>}, {transform_indices = @transform_4, window_bounds = array<i64: 8, 128>}]} {
    %c0_i32 = arith.constant 0 : i32
    %0 = arith.cmpi eq, %arg2, %c0_i32 : i32
    %1 = arith.extui %0 : i1 to i32
    %c0_i32_0 = arith.constant 0 : i32
    %2 = arith.cmpi ne, %1, %c0_i32_0 : i32
    scf.if %2 {
      %cst_10 = arith.constant 0.000000e+00 : f32
      %12 = vector.broadcast %cst_10 : f32 to vector<128x128xf32>
      %c0_11 = arith.constant 0 : index
      %c0_12 = arith.constant 0 : index
      %13 = vector.load %arg8[%c0_11, %c0_12] : memref<128x128xf32, #tpu.memory_space<vmem>>, vector<128x128xf32>
      tpu.vector_store %arg8[%c0_11, %c0_12], %12 {strides = array<i32>} : memref<128x128xf32, #tpu.memory_space<vmem>>, vector<128x128xf32>,
    } else {
    }
    %c0 = arith.constant 0 : index
    %c0_1 = arith.constant 0 : index
    %3 = vector.load %arg8[%c0, %c0_1] : memref<128x128xf32, #tpu.memory_space<vmem>>, vector<128x128xf32>
    %c0_2 = arith.constant 0 : index
    %c0_3 = arith.constant 0 : index
    %4 = vector.load %arg3[%c0_2, %c0_3] : memref<128x256xbf16, #tpu.memory_space<vmem>>, vector<128x256xbf16>
    %c0_4 = arith.constant 0 : index
    %c0_5 = arith.constant 0 : index
    %5 = vector.load %arg4[%c0_4, %c0_5] : memref<256x128xbf16, #tpu.memory_space<vmem>>, vector<256x128xbf16>
    %cst = arith.constant dense<0.000000e+00> : vector<128x128xf32>
    %6 = tpu.matmul %4, %5, %cst {dimension_numbers = #tpu.dot_dimension_numbers<[1], [0], [0], [1], [0, 0, 1, 1], [], []>} : vector<128x256xbf16>, vector<256x128xbf16>, vector<128x128xf32> -> vector<128x128xf32>
    %7 = arith.addf %3, %6 : vector<128x128xf32>
    %c0_6 = arith.constant 0 : index
    %c0_7 = arith.constant 0 : index
    %8 = vector.load %arg8[%c0_6, %c0_7] : memref<128x128xf32, #tpu.memory_space<vmem>>, vector<128x128xf32>
    tpu.vector_store %arg8[%c0_6, %c0_7], %7 {strides = array<i32>} : memref<128x128xf32, #tpu.memory_space<vmem>>, vector<128x128xf32>,
    %c0_i32_8 = arith.constant 0 : i32
    %9 = arith.cmpi eq, %arg2, %c0_i32_8 : i32
    %10 = arith.extui %9 : i1 to i32
    %c0_i32_9 = arith.constant 0 : i32
    %11 = arith.cmpi ne, %10, %c0_i32_9 : i32
    scf.if %11 {
      %c0_10 = arith.constant 0 : index
      %c0_11 = arith.constant 0 : index
      %12 = vector.load %arg8[%c0_10, %c0_11] : memref<128x128xf32, #tpu.memory_space<vmem>>, vector<128x128xf32>
      %13 = arith.truncf %12 : vector<128x128xf32> to vector<128x128xbf16>
      %c0_12 = arith.constant 0 : index
      %c0_13 = arith.constant 0 : index
      %14 = vector.load %arg5[%c0_12, %c0_13] : memref<128x128xbf16, #tpu.memory_space<vmem>>, vector<128x128xbf16>
      tpu.vector_store %arg5[%c0_12, %c0_13], %13 {strides = array<i32>} : memref<128x128xbf16, #tpu.memory_space<vmem>>, vector<128x128xbf16>,
      %cst_14 = arith.constant dense<0.000000e+00> : vector<128xf32>
      %15 = vector.multi_reduction <add>, %12, %cst_14 [0] : vector<128x128xf32> to vector<128xf32>
      %16 = vector.shape_cast %15 : vector<128xf32> to vector<1x128xf32>
      %17 = arith.mulf %12, %12 : vector<128x128xf32>
      %cst_15 = arith.constant dense<0.000000e+00> : vector<128xf32>
      %18 = vector.multi_reduction <add>, %17, %cst_15 [0] : vector<128x128xf32> to vector<128xf32>
      %19 = vector.shape_cast %18 : vector<128xf32> to vector<1x128xf32>
      %20 = vector.shape_cast %16 : vector<1x128xf32> to vector<1x128xf32>
      %21 = vector.broadcast %20 : vector<1x128xf32> to vector<8x128xf32>
      %c0_16 = arith.constant 0 : index
      %c0_17 = arith.constant 0 : index
      %22 = vector.load %arg6[%c0_16, %c0_17] : memref<8x128xf32, #tpu.memory_space<vmem>>, vector<8x128xf32>
      tpu.vector_store %arg6[%c0_16, %c0_17], %21 {strides = array<i32>} : memref<8x128xf32, #tpu.memory_space<vmem>>, vector<8x128xf32>,
      %23 = vector.shape_cast %19 : vector<1x128xf32> to vector<1x128xf32>
      %24 = vector.broadcast %23 : vector<1x128xf32> to vector<8x128xf32>
      %c0_18 = arith.constant 0 : index
      %c0_19 = arith.constant 0 : index
      %25 = vector.load %arg7[%c0_18, %c0_19] : memref<8x128xf32, #tpu.memory_space<vmem>>, vector<8x128xf32>
      tpu.vector_store %arg7[%c0_18, %c0_19], %24 {strides = array<i32>} : memref<8x128xf32, #tpu.memory_space<vmem>>, vector<8x128xf32>,
    } else {
    }
    return
  }
  func.func @transform_0(%arg0: i32, %arg1: i32, %arg2: i32) -> (i32, i32) {
    %c0_i32 = arith.constant 0 : i32
    return %arg0, %arg2 : i32, i32
  }
  func.func @transform_1(%arg0: i32, %arg1: i32, %arg2: i32) -> (i32, i32) {
    %c0_i32 = arith.constant 0 : i32
    return %arg2, %arg1 : i32, i32
  }
  func.func @transform_2(%arg0: i32, %arg1: i32, %arg2: i32) -> (i32, i32) {
    %c0_i32 = arith.constant 0 : i32
    return %arg0, %arg1 : i32, i32
  }
  func.func @transform_3(%arg0: i32, %arg1: i32, %arg2: i32) -> (i32, i32) {
    %c0_i32 = arith.constant 0 : i32
    return %arg0, %arg1 : i32, i32
  }
  func.func @transform_4(%arg0: i32, %arg1: i32, %arg2: i32) -> (i32, i32) {
    %c0_i32 = arith.constant 0 : i32
    return %arg0, %arg1 : i32, i32
  }
}

</mosaic_0001>

<llo_original>
// kernel: tpu_custom_call.1
$region0: #{tpu_custom_call.1}
  #allocation0 [shape = 'u32[]', space=smem, size = 0x4, offset = 0x4, fixed_abs, tag = 'smem constant byte address 0x4 - core index']
  #allocation1 [shape = 'u32[144,128]{1,0:T(1,128)}', space=vmem, size = 0x12000, scoped, tag = 'internal scratch']
  #allocation2 [shape = 'f32[128,128]{1,0:T(8,128)}', space=vmem, size = 0x10000, scoped, tag = 'scratch operand']
  %s0 = inlined_call_operand.hbm [shape: bf16[128,256], index: 0, kind: input, shape index: {}]
  %s1 = inlined_call_operand.hbm [shape: bf16[256,128], index: 1, kind: input, shape index: {}]
  %s2 = inlined_call_operand.hbm [shape: bf16[128,128], index: 2, kind: output, shape index: {0}]
  %s3 = inlined_call_operand.hbm [shape: f32[8,128], index: 3, kind: output, shape index: {1}]
  %s4 = inlined_call_operand.hbm [shape: f32[8,128], index: 4, kind: output, shape index: {2}]
  %5 = xla_tuple %s2, %s3, %s4
  %s6 = sld [smem:[#allocation0]]
  $region50: #{tpu_custom_call.1} parent=0
    _
  %s8 = ssub.s32 1, %s6
  %s9 = scalar_select 0, %s8, %s6
  $region1: #{tpu_custom_call.1} parent=0
    #allocation3 [shape = 'u8[65536]{0}', space=vmem, size = 0x10000, scoped, tag = 'input window, operand 0, single buffered']
    #allocation4 [shape = 's32[1]{0}', space=sflag, size = 0x4, scoped, tag = 'scoped memory for tpu_custom_call.1']
    #allocation5 [shape = 's32[1]{0}', space=sflag, size = 0x4, scoped, tag = 'scoped memory for tpu_custom_call.1']
    #allocation6 [shape = 'u8[65536]{0}', space=vmem, size = 0x10000, scoped, tag = 'input window, operand 1, single buffered']
    #allocation7 [shape = 's32[1]{0}', space=sflag, size = 0x4, scoped, tag = 'scoped memory for tpu_custom_call.1']
    #allocation8 [shape = 'u8[32768]{0}', space=vmem, size = 0x8000, scoped, tag = 'output window, operand 0, single buffered']
    #allocation9 [shape = 'u8[4096]{0}', space=vmem, size = 0x1000, scoped, tag = 'output window, operand 1, single buffered']
    #allocation10 [shape = 's32[1]{0}', space=sflag, size = 0x4, scoped, tag = 'scoped memory for tpu_custom_call.1']
    #allocation11 [shape = 'u8[4096]{0}', space=vmem, size = 0x1000, scoped, tag = 'output window, operand 2, single buffered']
    %10 = vsyncpa [#allocation4], 0
    %11 = vsyncpa [#allocation7], 0
    %12 = vsyncpa [#allocation5], 0
    %13 = vsyncpa [#allocation10], 0
    // Predicated region
    $region2: #{tpu_custom_call.1} parent=1 // pred_check
      _
    $region3: #{tpu_custom_call.1} parent=1 // pred_check_branch
      %15 = sbr.rel (0) target = $region5
    $region4: #{tpu_custom_call.1} parent=1 // pred_region
      %s17 = ssub.s32 2048, 2048
      %18 = vsyncadd [#allocation4], %s17
      %s19 = sshll.u32 [#allocation3], 4
      %s20 = int_to_ptr.vmem [resolvable:$true] %s19
      %25 = dma.hbm_to_vmem [thread:$0]  %s0, 2048, %s20, [#allocation4], 128, 128, 8
    $region5: #{tpu_custom_call.1} parent=1 // pred_fallthru
      _
    // Predicated region
    $region6: #{tpu_custom_call.1} parent=1 // pred_check
      _
    $region7: #{tpu_custom_call.1} parent=1 // pred_check_branch
      %27 = sbr.rel (0) target = $region9
    $region8: #{tpu_custom_call.1} parent=1 // pred_region
      %s29 = ssub.s32 2048, 2048
      %30 = vsyncadd [#allocation7], %s29
      %s31 = sshll.u32 [#allocation6], 4
      %s32 = int_to_ptr.vmem [resolvable:$true] %s31
      %37 = dma.hbm_to_vmem [thread:$0]  %s1, 2048, %s32, [#allocation7], 64, 64, 4
    $region9: #{tpu_custom_call.1} parent=1 // pred_fallthru
      _
    // Predicated region
    $region10: #{tpu_custom_call.1} parent=1 // pred_check
      _
    $region11: #{tpu_custom_call.1} parent=1 // pred_check_branch
      %39 = sbr.rel (0) target = $region13
    $region12: #{tpu_custom_call.1} parent=1 // pred_region
      %40 = dma.done [#allocation4], 2048
    $region13: #{tpu_custom_call.1} parent=1 // pred_fallthru
      _
    // Predicated region
    $region14: #{tpu_custom_call.1} parent=1 // pred_check
      _
    $region15: #{tpu_custom_call.1} parent=1 // pred_check_branch
      %42 = sbr.rel (0) target = $region17
    $region16: #{tpu_custom_call.1} parent=1 // pred_region
      %43 = dma.done [#allocation7], 2048
    $region17: #{tpu_custom_call.1} parent=1 // pred_fallthru
      _
    %p45 = scmp.eq.s32.totalorder 0, 0
    // Predicated region
    $region18: #{tpu_custom_call.1} parent=1 // pred_check
      %p46 = pneg %p45
    $region19: #{tpu_custom_call.1} parent=1 // pred_check_branch
      %48 = sbr.rel (%p46) target = $region21
    $region20: #{tpu_custom_call.1} parent=1 // pred_region
      %49 = vst [vmem:[#allocation2] sm:$0xff] 0.0
      %50 = vst [vmem:[#allocation2 + $0x8] sm:$0xff] 0.0
      %51 = vst [vmem:[#allocation2 + $0x10] sm:$0xff] 0.0
      %52 = vst [vmem:[#allocation2 + $0x18] sm:$0xff] 0.0
      %53 = vst [vmem:[#allocation2 + $0x20] sm:$0xff] 0.0
      %54 = vst [vmem:[#allocation2 + $0x28] sm:$0xff] 0.0
      %55 = vst [vmem:[#allocation2 + $0x30] sm:$0xff] 0.0
      %56 = vst [vmem:[#allocation2 + $0x38] sm:$0xff] 0.0
      %57 = vst [vmem:[#allocation2 + $0x40] sm:$0xff] 0.0
      %58 = vst [vmem:[#allocation2 + $0x48] sm:$0xff] 0.0
      %59 = vst [vmem:[#allocation2 + $0x50] sm:$0xff] 0.0
      %60 = vst [vmem:[#allocation2 + $0x58] sm:$0xff] 0.0
      %61 = vst [vmem:[#allocation2 + $0x60] sm:$0xff] 0.0
      %62 = vst [vmem:[#allocation2 + $0x68] sm:$0xff] 0.0
      %63 = vst [vmem:[#allocation2 + $0x70] sm:$0xff] 0.0
      %64 = vst [vmem:[#allocation2 + $0x78] sm:$0xff] 0.0
    $region21: #{tpu_custom_call.1} parent=1 // pred_fallthru
      _
    %v65 = vld [vmem:[#allocation2] sm:$0xff]
    %v66 = vld [vmem:[#allocation2 + $0x8] sm:$0xff]
    %v67 = vld [vmem:[#allocation2 + $0x10] sm:$0xff]
    %v68 = vld [vmem:[#allocation2 + $0x18] sm:$0xff]
    %v69 = vld [vmem:[#allocation2 + $0x20] sm:$0xff]
    %v70 = vld [vmem:[#allocation2 + $0x28] sm:$0xff]
    %v71 = vld [vmem:[#allocation2 + $0x30] sm:$0xff]
    %v72 = vld [vmem:[#allocation2 + $0x38] sm:$0xff]
    %v73 = vld [vmem:[#allocation2 + $0x40] sm:$0xff]
    %v74 = vld [vmem:[#allocation2 + $0x48] sm:$0xff]
    %v75 = vld [vmem:[#allocation2 + $0x50] sm:$0xff]
    %v76 = vld [vmem:[#allocation2 + $0x58] sm:$0xff]
    %v77 = vld [vmem:[#allocation2 + $0x60] sm:$0xff]
    %v78 = vld [vmem:[#allocation2 + $0x68] sm:$0xff]
    %v79 = vld [vmem:[#allocation2 + $0x70] sm:$0xff]
    %v80 = vld [vmem:[#allocation2 + $0x78] sm:$0xff]
    %v81 = vld [vmem:[#allocation3] sm:$0xff]
    %v82 = vld [vmem:[#allocation3 + $0x8] sm:$0xff]
    %v83 = vld [vmem:[#allocation3 + $0x10] sm:$0xff]
    %v84 = vld [vmem:[#allocation3 + $0x18] sm:$0xff]
    %v85 = vld [vmem:[#allocation3 + $0x20] sm:$0xff]
    %v86 = vld [vmem:[#allocation3 + $0x28] sm:$0xff]
    %v87 = vld [vmem:[#allocation3 + $0x30] sm:$0xff]
    %v88 = vld [vmem:[#allocation3 + $0x38] sm:$0xff]
    %v89 = vld [vmem:[#allocation3 + $0x40] sm:$0xff]
    %v90 = vld [vmem:[#allocation3 + $0x48] sm:$0xff]
    %v91 = vld [vmem:[#allocation3 + $0x50] sm:$0xff]
    %v92 = vld [vmem:[#allocation3 + $0x58] sm:$0xff]
    %v93 = vld [vmem:[#allocation3 + $0x60] sm:$0xff]
    %v94 = vld [vmem:[#allocation3 + $0x68] sm:$0xff]
    %v95 = vld [vmem:[#allocation3 + $0x70] sm:$0xff]
    %v96 = vld [vmem:[#allocation3 + $0x78] sm:$0xff]
    %v97 = vld [vmem:[#allocation6] sm:$0xf]
    %v98 = vld [vmem:[#allocation6 + $0x4] sm:$0xf]
    %v99 = vld [vmem:[#allocation6 + $0x8] sm:$0xf]
    %v100 = vld [vmem:[#allocation6 + $0xc] sm:$0xf]
    %v101 = vld [vmem:[#allocation6 + $0x10] sm:$0xf]
    %v102 = vld [vmem:[#allocation6 + $0x14] sm:$0xf]
    %v103 = vld [vmem:[#allocation6 + $0x18] sm:$0xf]
    %v104 = vld [vmem:[#allocation6 + $0x1c] sm:$0xf]
    %v105 = vld [vmem:[#allocation6 + $0x20] sm:$0xf]
    %v106 = vld [vmem:[#allocation6 + $0x24] sm:$0xf]
    %v107 = vld [vmem:[#allocation6 + $0x28] sm:$0xf]
    %v108 = vld [vmem:[#allocation6 + $0x2c] sm:$0xf]
    %v109 = vld [vmem:[#allocation6 + $0x30] sm:$0xf]
    %v110 = vld [vmem:[#allocation6 + $0x34] sm:$0xf]
    %v111 = vld [vmem:[#allocation6 + $0x38] sm:$0xf]
    %v112 = vld [vmem:[#allocation6 + $0x3c] sm:$0xf]
    %v113 = vld [vmem:[#allocation6 + $0x40] sm:$0xf]
    %v114 = vld [vmem:[#allocation6 + $0x44] sm:$0xf]
    %v115 = vld [vmem:[#allocation6 + $0x48] sm:$0xf]
    %v116 = vld [vmem:[#allocation6 + $0x4c] sm:$0xf]
    %v117 = vld [vmem:[#allocation6 + $0x50] sm:$0xf]
    %v118 = vld [vmem:[#allocation6 + $0x54] sm:$0xf]
    %v119 = vld [vmem:[#allocation6 + $0x58] sm:$0xf]
    %v120 = vld [vmem:[#allocation6 + $0x5c] sm:$0xf]
    %v121 = vld [vmem:[#allocation6 + $0x60] sm:$0xf]
    %v122 = vld [vmem:[#allocation6 + $0x64] sm:$0xf]
    %v123 = vld [vmem:[#allocation6 + $0x68] sm:$0xf]
    %v124 = vld [vmem:[#allocation6 + $0x6c] sm:$0xf]
    %v125 = vld [vmem:[#allocation6 + $0x70] sm:$0xf]
    %v126 = vld [vmem:[#allocation6 + $0x74] sm:$0xf]
    %v127 = vld [vmem:[#allocation6 + $0x78] sm:$0xf]
    %v128 = vld [vmem:[#allocation6 + $0x7c] sm:$0xf]
    %v145 = vunpack.c.l.b16 %v81
    %v146 = vunpack.c.h.b16 %v81
    %v147 = vunpack.c.l.b16 %v82
    %v148 = vunpack.c.h.b16 %v82
    %v149 = vunpack.c.l.b16 %v83
    %v150 = vunpack.c.h.b16 %v83
    %v151 = vunpack.c.l.b16 %v84
    %v152 = vunpack.c.h.b16 %v84
    %v153 = vunpack.c.l.b16 %v85
    %v154 = vunpack.c.h.b16 %v85
    %v155 = vunpack.c.l.b16 %v86
    %v156 = vunpack.c.h.b16 %v86
    %v157 = vunpack.c.l.b16 %v87
    %v158 = vunpack.c.h.b16 %v87
    %v159 = vunpack.c.l.b16 %v88
    %v160 = vunpack.c.h.b16 %v88
    %v161 = vunpack.c.l.b16 %v89
    %v162 = vunpack.c.h.b16 %v89
    %v163 = vunpack.c.l.b16 %v90
    %v164 = vunpack.c.h.b16 %v90
    %v165 = vunpack.c.l.b16 %v91
    %v166 = vunpack.c.h.b16 %v91
    %v167 = vunpack.c.l.b16 %v92
    %v168 = vunpack.c.h.b16 %v92
    %v169 = vunpack.c.l.b16 %v93
    %v170 = vunpack.c.h.b16 %v93
    %v171 = vunpack.c.l.b16 %v94
    %v172 = vunpack.c.h.b16 %v94
    %v173 = vunpack.c.l.b16 %v95
    %v174 = vunpack.c.h.b16 %v95
    %v175 = vunpack.c.l.b16 %v96
    %v176 = vunpack.c.h.b16 %v96
    %v177 = vpack.c.b16 %v147, %v145
    %v178 = vpack.c.b16 %v148, %v146
    %v179 = vpack.c.b16 %v151, %v149
    %v180 = vpack.c.b16 %v152, %v150
    %v181 = vpack.c.b16 %v155, %v153
    %v182 = vpack.c.b16 %v156, %v154
    %v183 = vpack.c.b16 %v159, %v157
    %v184 = vpack.c.b16 %v160, %v158
    %v185 = vpack.c.b16 %v163, %v161
    %v186 = vpack.c.b16 %v164, %v162
    %v187 = vpack.c.b16 %v167, %v165
    %v188 = vpack.c.b16 %v168, %v166
    %v189 = vpack.c.b16 %v171, %v169
    %v190 = vpack.c.b16 %v172, %v170
    %v191 = vpack.c.b16 %v175, %v173
    %v192 = vpack.c.b16 %v176, %v174
    %v241 = vunpack.c.l.b16 %v97
    %v242 = vunpack.c.l.b16 %v98
    %v243 = vunpack.c.l.b16 %v99
    %v244 = vunpack.c.l.b16 %v100
    %v245 = vunpack.c.l.b16 %v101
    %v246 = vunpack.c.l.b16 %v102
    %v247 = vunpack.c.l.b16 %v103
    %v248 = vunpack.c.l.b16 %v104
    %v249 = vunpack.c.l.b16 %v105
    %v250 = vunpack.c.l.b16 %v106
    %v251 = vunpack.c.l.b16 %v107
    %v252 = vunpack.c.l.b16 %v108
    %v253 = vunpack.c.l.b16 %v109
    %v254 = vunpack.c.l.b16 %v110
    %v255 = vunpack.c.l.b16 %v111
    %v256 = vunpack.c.l.b16 %v112
    %v257 = vunpack.c.l.b16 %v113
    %v258 = vunpack.c.l.b16 %v114
    %v259 = vunpack.c.l.b16 %v115
    %v260 = vunpack.c.l.b16 %v116
    %v261 = vunpack.c.l.b16 %v117
    %v262 = vunpack.c.l.b16 %v118
    %v263 = vunpack.c.l.b16 %v119
    %v264 = vunpack.c.l.b16 %v120
    %v265 = vunpack.c.l.b16 %v121
    %v266 = vunpack.c.l.b16 %v122
    %v267 = vunpack.c.l.b16 %v123
    %v268 = vunpack.c.l.b16 %v124
    %v269 = vunpack.c.l.b16 %v125
    %v270 = vunpack.c.l.b16 %v126
    %v271 = vunpack.c.l.b16 %v127
    %v272 = vunpack.c.l.b16 %v128
    %v273 = vpack.c.b16 %v242, %v241
    %v274 = vpack.c.b16 %v244, %v243
    %v275 = vpack.c.b16 %v246, %v245
    %v276 = vpack.c.b16 %v248, %v247
    %v277 = vpack.c.b16 %v250, %v249
    %v278 = vpack.c.b16 %v252, %v251
    %v279 = vpack.c.b16 %v254, %v253
    %v280 = vpack.c.b16 %v256, %v255
    %v281 = vpack.c.b16 %v258, %v257
    %v282 = vpack.c.b16 %v260, %v259
    %v283 = vpack.c.b16 %v262, %v261
    %v284 = vpack.c.b16 %v264, %v263
    %v285 = vpack.c.b16 %v266, %v265
    %v286 = vpack.c.b16 %v268, %v267
    %v287 = vpack.c.b16 %v270, %v269
    %v288 = vpack.c.b16 %v272, %v271
    %305 = vmatprep.subr.bf16.mxu0 0
    %306 = vmatpush1.bf16.msra.mxu0 %v273
    %307 = vmatprep.subr.bf16.mxu0 0
    %308 = vmatpush1.bf16.msra.mxu0 %v274
    %309 = vmatprep.subr.bf16.mxu0 0
    %310 = vmatpush1.bf16.msra.mxu0 %v275
    %311 = vmatprep.subr.bf16.mxu0 0
    %312 = vmatpush1.bf16.msra.mxu0 %v276
    %313 = vmatprep.subr.bf16.mxu0 0
    %314 = vmatpush1.bf16.msra.mxu0 %v277
    %315 = vmatprep.subr.bf16.mxu0 0
    %316 = vmatpush1.bf16.msra.mxu0 %v278
    %317 = vmatprep.subr.bf16.mxu0 0
    %318 = vmatpush1.bf16.msra.mxu0 %v279
    %319 = vmatprep.subr.bf16.mxu0 0
    %320 = vmatpush1.bf16.msra.mxu0 %v280
    %321 = vmatprep.subr.bf16.mxu0 0
    %322 = vmatpush1.bf16.msra.mxu0 %v281
    %323 = vmatprep.subr.bf16.mxu0 0
    %324 = vmatpush1.bf16.msra.mxu0 %v282
    %325 = vmatprep.subr.bf16.mxu0 0
    %326 = vmatpush1.bf16.msra.mxu0 %v283
    %327 = vmatprep.subr.bf16.mxu0 0
    %328 = vmatpush1.bf16.msra.mxu0 %v284
    %329 = vmatprep.subr.bf16.mxu0 0
    %330 = vmatpush1.bf16.msra.mxu0 %v285
    %331 = vmatprep.subr.bf16.mxu0 0
    %332 = vmatpush1.bf16.msra.mxu0 %v286
    %333 = vmatprep.subr.bf16.mxu0 0
    %334 = vmatpush1.bf16.msra.mxu0 %v287
    %335 = vmatprep.subr.bf16.mxu0 0
    %336 = vmatpush1.bf16.msra.mxu0 %v288
    %337 = vmatprep.mubr.bf16.mxu0 %v178
    %338 = vmatmul.mubr.bf16.gmra.mrb[0].mxu0 %v177
    %v339 = vpop.f32.mrb[0].mxu0
    %v340 = vadd.f32 0.0, %v339
    %v341 = vpop.f32.mrb[0].mxu0
    %v342 = vpop.f32.mrb[0].mxu0
    %v343 = vadd.f32 0.0, %v342
    %v344 = vpop.f32.mrb[0].mxu0
    %345 = vmatprep.mubr.bf16.mxu0 %v180
    %346 = vmatmul.mubr.bf16.gmra.mrb[0].mxu0 %v179
    %v347 = vpop.f32.mrb[0].mxu0
    %v348 = vadd.f32 0.0, %v347
    %v349 = vpop.f32.mrb[0].mxu0
    %v350 = vpop.f32.mrb[0].mxu0
    %v351 = vadd.f32 0.0, %v350
    %v352 = vpop.f32.mrb[0].mxu0
    %353 = vmatprep.mubr.bf16.mxu0 %v182
    %354 = vmatmul.mubr.bf16.gmra.mrb[0].mxu0 %v181
    %v355 = vpop.f32.mrb[0].mxu0
    %v356 = vadd.f32 0.0, %v355
    %v357 = vpop.f32.mrb[0].mxu0
    %v358 = vpop.f32.mrb[0].mxu0
    %v359 = vadd.f32 0.0, %v358
    %v360 = vpop.f32.mrb[0].mxu0
    %361 = vmatprep.mubr.bf16.mxu0 %v184
    %362 = vmatmul.mubr.bf16.gmra.mrb[0].mxu0 %v183
    %v363 = vpop.f32.mrb[0].mxu0
    %v364 = vadd.f32 0.0, %v363
    %v365 = vpop.f32.mrb[0].mxu0
    %v366 = vpop.f32.mrb[0].mxu0
    %v367 = vadd.f32 0.0, %v366
    %v368 = vpop.f32.mrb[0].mxu0
    %369 = vmatprep.mubr.bf16.mxu0 %v186
    %370 = vmatmul.mubr.bf16.gmra.mrb[0].mxu0 %v185
    %v371 = vpop.f32.mrb[0].mxu0
    %v372 = vadd.f32 0.0, %v371
    %v373 = vpop.f32.mrb[0].mxu0
    %v374 = vpop.f32.mrb[0].mxu0
    %v375 = vadd.f32 0.0, %v374
    %v376 = vpop.f32.mrb[0].mxu0
    %377 = vmatprep.mubr.bf16.mxu0 %v188
    %378 = vmatmul.mubr.bf16.gmra.mrb[0].mxu0 %v187
    %v379 = vpop.f32.mrb[0].mxu0
    %v380 = vadd.f32 0.0, %v379
    %v381 = vpop.f32.mrb[0].mxu0
    %v382 = vpop.f32.mrb[0].mxu0
    %v383 = vadd.f32 0.0, %v382
    %v384 = vpop.f32.mrb[0].mxu0
    %385 = vmatprep.mubr.bf16.mxu0 %v190
    %386 = vmatmul.mubr.bf16.gmra.mrb[0].mxu0 %v189
    %v387 = vpop.f32.mrb[0].mxu0
    %v388 = vadd.f32 0.0, %v387
    %v389 = vpop.f32.mrb[0].mxu0
    %v390 = vpop.f32.mrb[0].mxu0
    %v391 = vadd.f32 0.0, %v390
    %v392 = vpop.f32.mrb[0].mxu0
    %393 = vmatprep.mubr.bf16.mxu0 %v192
    %394 = vmatmul.mubr.bf16.gmra.mrb[0].mxu0 %v191
    %v395 = vpop.f32.mrb[0].mxu0
    %v396 = vadd.f32 0.0, %v395
    %v397 = vpop.f32.mrb[0].mxu0
    %v398 = vpop.f32.mrb[0].mxu0
    %v399 = vadd.f32 0.0, %v398
    %v400 = vpop.f32.mrb[0].mxu0
    %401 = vdwg.mxu0
    %v402 = vadd.f32 %v65, %v340
    %v403 = vadd.f32 %v66, %v343
    %v404 = vadd.f32 %v67, %v348
    %v405 = vadd.f32 %v68, %v351
    %v406 = vadd.f32 %v69, %v356
    %v407 = vadd.f32 %v70, %v359
    %v408 = vadd.f32 %v71, %v364
    %v409 = vadd.f32 %v72, %v367
    %v410 = vadd.f32 %v73, %v372
    %v411 = vadd.f32 %v74, %v375
    %v412 = vadd.f32 %v75, %v380
    %v413 = vadd.f32 %v76, %v383
    %v414 = vadd.f32 %v77, %v388
    %v415 = vadd.f32 %v78, %v391
    %v416 = vadd.f32 %v79, %v396
    %v417 = vadd.f32 %v80, %v399
    %418 = vst [vmem:[#allocation2] sm:$0xff] %v402
    %419 = vst [vmem:[#allocation2 + $0x8] sm:$0xff] %v403
    %420 = vst [vmem:[#allocation2 + $0x10] sm:$0xff] %v404
    %421 = vst [vmem:[#allocation2 + $0x18] sm:$0xff] %v405
    %422 = vst [vmem:[#allocation2 + $0x20] sm:$0xff] %v406
    %423 = vst [vmem:[#allocation2 + $0x28] sm:$0xff] %v407
    %424 = vst [vmem:[#allocation2 + $0x30] sm:$0xff] %v408
    %425 = vst [vmem:[#allocation2 + $0x38] sm:$0xff] %v409
    %426 = vst [vmem:[#allocation2 + $0x40] sm:$0xff] %v410
    %427 = vst [vmem:[#allocation2 + $0x48] sm:$0xff] %v411
    %428 = vst [vmem:[#allocation2 + $0x50] sm:$0xff] %v412
    %429 = vst [vmem:[#allocation2 + $0x58] sm:$0xff] %v413
    %430 = vst [vmem:[#allocation2 + $0x60] sm:$0xff] %v414
    %431 = vst [vmem:[#allocation2 + $0x68] sm:$0xff] %v415
    %432 = vst [vmem:[#allocation2 + $0x70] sm:$0xff] %v416
    %433 = vst [vmem:[#allocation2 + $0x78] sm:$0xff] %v417
    // Predicated region
    $region22: #{tpu_custom_call.1} parent=1 // pred_check
      %p434 = pneg %p45
    $region23: #{tpu_custom_call.1} parent=1 // pred_check_branch
      %436 = sbr.rel (%p434) target = $region25
    $region24: #{tpu_custom_call.1} parent=1 // pred_region
      %v437 = vld [vmem:[#allocation2] sm:$0xff]
      %v438 = vld [vmem:[#allocation2 + $0x8] sm:$0xff]
      %v439 = vld [vmem:[#allocation2 + $0x10] sm:$0xff]
      %v440 = vld [vmem:[#allocation2 + $0x18] sm:$0xff]
      %v441 = vld [vmem:[#allocation2 + $0x20] sm:$0xff]
      %v442 = vld [vmem:[#allocation2 + $0x28] sm:$0xff]
      %v443 = vld [vmem:[#allocation2 + $0x30] sm:$0xff]
      %v444 = vld [vmem:[#allocation2 + $0x38] sm:$0xff]
      %v445 = vld [vmem:[#allocation2 + $0x40] sm:$0xff]
      %v446 = vld [vmem:[#allocation2 + $0x48] sm:$0xff]
      %v447 = vld [vmem:[#allocation2 + $0x50] sm:$0xff]
      %v448 = vld [vmem:[#allocation2 + $0x58] sm:$0xff]
      %v449 = vld [vmem:[#allocation2 + $0x60] sm:$0xff]
      %v450 = vld [vmem:[#allocation2 + $0x68] sm:$0xff]
      %v451 = vld [vmem:[#allocation2 + $0x70] sm:$0xff]
      %v452 = vld [vmem:[#allocation2 + $0x78] sm:$0xff]
      %v453 = vpack.c.bf16 %v438, %v437
      %v454 = vpack.c.bf16 %v440, %v439
      %v455 = vpack.c.bf16 %v442, %v441
      %v456 = vpack.c.bf16 %v444, %v443
      %v457 = vpack.c.bf16 %v446, %v445
      %v458 = vpack.c.bf16 %v448, %v447
      %v459 = vpack.c.bf16 %v450, %v449
      %v460 = vpack.c.bf16 %v452, %v451
      %v469 = vunpack.c.l.b16 %v453
      %v470 = vunpack.c.h.b16 %v453
      %v471 = vunpack.c.l.b16 %v454
      %v472 = vunpack.c.h.b16 %v454
      %v473 = vunpack.c.l.b16 %v455
      %v474 = vunpack.c.h.b16 %v455
      %v475 = vunpack.c.l.b16 %v456
      %v476 = vunpack.c.h.b16 %v456
      %v477 = vunpack.c.l.b16 %v457
      %v478 = vunpack.c.h.b16 %v457
      %v479 = vunpack.c.l.b16 %v458
      %v480 = vunpack.c.h.b16 %v458
      %v481 = vunpack.c.l.b16 %v459
      %v482 = vunpack.c.h.b16 %v459
      %v483 = vunpack.c.l.b16 %v460
      %v484 = vunpack.c.h.b16 %v460
      %v485 = vpack.c.b16 %v469, %v469
      %v486 = vpack.c.b16 %v470, %v470
      %v487 = vpack.c.b16 %v471, %v471
      %v488 = vpack.c.b16 %v472, %v472
      %v489 = vpack.c.b16 %v473, %v473
      %v490 = vpack.c.b16 %v474, %v474
      %v491 = vpack.c.b16 %v475, %v475
      %v492 = vpack.c.b16 %v476, %v476
      %v493 = vpack.c.b16 %v477, %v477
      %v494 = vpack.c.b16 %v478, %v478
      %v495 = vpack.c.b16 %v479, %v479
      %v496 = vpack.c.b16 %v480, %v480
      %v497 = vpack.c.b16 %v481, %v481
      %v498 = vpack.c.b16 %v482, %v482
      %v499 = vpack.c.b16 %v483, %v483
      %v500 = vpack.c.b16 %v484, %v484
      %517 = vst [vmem:[#allocation8] sm:$0xf] %v485
      %518 = vst [vmem:[#allocation8 + $0x4] sm:$0xf] %v486
      %519 = vst [vmem:[#allocation8 + $0x8] sm:$0xf] %v487
      %520 = vst [vmem:[#allocation8 + $0xc] sm:$0xf] %v488
      %521 = vst [vmem:[#allocation8 + $0x10] sm:$0xf] %v489
      %522 = vst [vmem:[#allocation8 + $0x14] sm:$0xf] %v490
      %523 = vst [vmem:[#allocation8 + $0x18] sm:$0xf] %v491
      %524 = vst [vmem:[#allocation8 + $0x1c] sm:$0xf] %v492
      %525 = vst [vmem:[#allocation8 + $0x20] sm:$0xf] %v493
      %526 = vst [vmem:[#allocation8 + $0x24] sm:$0xf] %v494
      %527 = vst [vmem:[#allocation8 + $0x28] sm:$0xf] %v495
      %528 = vst [vmem:[#allocation8 + $0x2c] sm:$0xf] %v496
      %529 = vst [vmem:[#allocation8 + $0x30] sm:$0xf] %v497
      %530 = vst [vmem:[#allocation8 + $0x34] sm:$0xf] %v498
      %531 = vst [vmem:[#allocation8 + $0x38] sm:$0xf] %v499
      %532 = vst [vmem:[#allocation8 + $0x3c] sm:$0xf] %v500
      %v533 = vadd.f32 %v437, %v438
      %v534 = vadd.f32 %v533, %v439
      %v535 = vadd.f32 %v534, %v440
      %v536 = vadd.f32 %v535, %v441
      %v537 = vadd.f32 %v536, %v442
      %v538 = vadd.f32 %v537, %v443
      %v539 = vadd.f32 %v538, %v444
      %v540 = vadd.f32 %v539, %v445
      %v541 = vadd.f32 %v540, %v446
      %v542 = vadd.f32 %v541, %v447
      %v543 = vadd.f32 %v542, %v448
      %v544 = vadd.f32 %v543, %v449
      %v545 = vadd.f32 %v544, %v450
      %v546 = vadd.f32 %v545, %v451
      %v547 = vadd.f32 %v546, %v452
      %v548 = vrot.slane %v547, 4
      %v549 = vadd.f32 %v547, %v548
      %v550 = vrot.slane %v549, 2
      %v551 = vadd.f32 %v549, %v550
      %v552 = vrot.slane %v551, 1
      %v553 = vadd.f32 %v551, %v552
      %v554 = vmul.f32 %v437, %v437
      %v555 = vmul.f32 %v438, %v438
      %v556 = vmul.f32 %v439, %v439
      %v557 = vmul.f32 %v440, %v440
      %v558 = vmul.f32 %v441, %v441
      %v559 = vmul.f32 %v442, %v442
      %v560 = vmul.f32 %v443, %v443
      %v561 = vmul.f32 %v444, %v444
      %v562 = vmul.f32 %v445, %v445
      %v563 = vmul.f32 %v446, %v446
      %v564 = vmul.f32 %v447, %v447
      %v565 = vmul.f32 %v448, %v448
      %v566 = vmul.f32 %v449, %v449
      %v567 = vmul.f32 %v450, %v450
      %v568 = vmul.f32 %v451, %v451
      %v569 = vmul.f32 %v452, %v452
      %v570 = vadd.f32 %v554, %v555
      %v571 = vadd.f32 %v570, %v556
      %v572 = vadd.f32 %v571, %v557
      %v573 = vadd.f32 %v572, %v558
      %v574 = vadd.f32 %v573, %v559
      %v575 = vadd.f32 %v574, %v560
      %v576 = vadd.f32 %v575, %v561
      %v577 = vadd.f32 %v576, %v562
      %v578 = vadd.f32 %v577, %v563
      %v579 = vadd.f32 %v578, %v564
      %v580 = vadd.f32 %v579, %v565
      %v581 = vadd.f32 %v580, %v566
      %v582 = vadd.f32 %v581, %v567
      %v583 = vadd.f32 %v582, %v568
      %v584 = vadd.f32 %v583, %v569
      %v585 = vrot.slane %v584, 4
      %v586 = vadd.f32 %v584, %v585
      %v587 = vrot.slane %v586, 2
      %v588 = vadd.f32 %v586, %v587
      %v589 = vrot.slane %v588, 1
      %v590 = vadd.f32 %v588, %v589
      %591 = vst [vmem:[#allocation9] sm:$0xff] %v553
      %592 = vst [vmem:[#allocation11] sm:$0xff] %v590
    $region25: #{tpu_custom_call.1} parent=1 // pred_fallthru
      _
    // Predicated region
    $region26: #{tpu_custom_call.1} parent=1 // pred_check
      _
    $region27: #{tpu_custom_call.1} parent=1 // pred_check_branch
      %594 = sbr.rel (0) target = $region29
    $region28: #{tpu_custom_call.1} parent=1 // pred_region
      %s596 = ssub.s32 1024, 1024
      %597 = vsyncadd [#allocation5], %s596
      %s598 = sshll.u32 [#allocation8], 4
      %s599 = int_to_ptr.vmem [resolvable:$true] %s598
      %604 = dma.vmem_to_hbm [thread:$0]  %s599, 1024, %s2, [#allocation5], 64, 64, 4
    $region29: #{tpu_custom_call.1} parent=1 // pred_fallthru
      _
    // Predicated region
    $region30: #{tpu_custom_call.1} parent=1 // pred_check
      _
    $region31: #{tpu_custom_call.1} parent=1 // pred_check_branch
      %606 = sbr.rel (0) target = $region33
    $region32: #{tpu_custom_call.1} parent=1 // pred_region
      %s608 = ssub.s32 128, 128
      %609 = vsyncadd [#allocation10], %s608
      %s611 = sshll.u32 [#allocation9], 4
      %s612 = int_to_ptr.vmem [resolvable:$true] %s611
      %614 = dma.vmem_to_hbm [thread:$0]  %s612, 128, %s3, [#allocation10]
    $region33: #{tpu_custom_call.1} parent=1 // pred_fallthru
      _
    // Predicated region
    $region34: #{tpu_custom_call.1} parent=1 // pred_check
      _
    $region35: #{tpu_custom_call.1} parent=1 // pred_check_branch
      %616 = sbr.rel (0) target = $region37
    $region36: #{tpu_custom_call.1} parent=1 // pred_region
      %s618 = ssub.s32 128, 128
      %619 = vsyncadd [#allocation10], %s618
      %s621 = sshll.u32 [#allocation11], 4
      %s622 = int_to_ptr.vmem [resolvable:$true] %s621
      %624 = dma.vmem_to_hbm [thread:$0]  %s622, 128, %s4, [#allocation10]
    $region37: #{tpu_custom_call.1} parent=1 // pred_fallthru
      _
    // Predicated region
    $region38: #{tpu_custom_call.1} parent=1 // pred_check
      _
    $region39: #{tpu_custom_call.1} parent=1 // pred_check_branch
      %626 = sbr.rel (0) target = $region41
    $region40: #{tpu_custom_call.1} parent=1 // pred_region
      %627 = dma.done [#allocation5], 1024
    $region41: #{tpu_custom_call.1} parent=1 // pred_fallthru
      _
    // Predicated region
    $region42: #{tpu_custom_call.1} parent=1 // pred_check
      _
    $region43: #{tpu_custom_call.1} parent=1 // pred_check_branch
      %629 = sbr.rel (0) target = $region45
    $region44: #{tpu_custom_call.1} parent=1 // pred_region
      %630 = dma.done [#allocation10], 128
    $region45: #{tpu_custom_call.1} parent=1 // pred_fallthru
      _
    // Predicated region
    $region46: #{tpu_custom_call.1} parent=1 // pred_check
      _
    $region47: #{tpu_custom_call.1} parent=1 // pred_check_branch
      %632 = sbr.rel (0) target = $region49
    $region48: #{tpu_custom_call.1} parent=1 // pred_region
      %633 = dma.done [#allocation10], 128
    $region49: #{tpu_custom_call.1} parent=1 // pred_fallthru
      _
    %634 = vsyncpa [#allocation4], 1
    %635 = vsyncpa [#allocation7], 1
    %636 = vsyncpa [#allocation5], 1
    %637 = vsyncpa [#allocation10], 1

</llo_original>
